<compile_context>
chip_gen: v5e
topology: v5e:2x2
jax: 0.10.0
libtpu: 0.0.40
codegen_flags: <defaults>
</compile_context>

<pallas_src>
import jax
import jax.numpy as jnp
from jax.experimental import pallas as pl
from jax.experimental.pallas import tpu as pltpu


DROP_P = 0.15
LEAKY_SLOPE = 0.01                                # nn.LeakyReLU() default
_DROP_THRESHOLD = int(round(DROP_P * (2 ** 32)))  # drop element if hash-bits < threshold
_GOLDEN = 0x9E3779B9


def _round_up(n, m):
    return ((n + m - 1) // m) * m


def _hash_u32(x):
    """lowbias32 integer hash — portable (plain int ops), good avalanche for dropout bits."""
    x = x ^ (x >> 16)
    x = x * jnp.uint32(0x7FEB352D)
    x = x ^ (x >> 15)
    x = x * jnp.uint32(0x846CA68B)
    x = x ^ (x >> 16)
    return x


def _mlp_kernel(seed_ref, x_ref, w1t_ref, b1_ref, w2t_ref, b2_ref, o_ref):
    # fc1: (TB, D_in) @ (D_in, Hp) -> (TB, Hp); bf16 operands, f32 accumulation on the MXU.
    h = jnp.dot(x_ref[...].astype(jnp.bfloat16), w1t_ref[...],
                preferred_element_type=jnp.float32)
    h = h + b1_ref[...]

    # LeakyReLU in f32 on the VPU (v5e has no bf16 VPU).
    h = jnp.where(h >= 0.0, h, LEAKY_SLOPE * h)

    # Inverted dropout (training semantics). Counter-based hash keyed on
    # (seed, global element index) -> distinct mask per batch tile, no hardware PRNG needed.
    tb, hp = h.shape
    row0 = (pl.program_id(0) * tb).astype(jnp.uint32)
    rows = jax.lax.broadcasted_iota(jnp.int32, (tb, hp), 0).astype(jnp.uint32)
    cols = jax.lax.broadcasted_iota(jnp.int32, (tb, hp), 1).astype(jnp.uint32)
    gidx = (row0 + rows) * jnp.uint32(hp) + cols
    seed = seed_ref[0].astype(jnp.uint32)
    bits = _hash_u32(gidx ^ (seed * jnp.uint32(_GOLDEN)))
    keep = bits >= jnp.uint32(_DROP_THRESHOLD)
    h = jnp.where(keep, h * (1.0 / (1.0 - DROP_P)), 0.0)

    # fc2: (TB, Hp) @ (Hp, Dp) -> (TB, Dp)
    out = jnp.dot(h.astype(jnp.bfloat16), w2t_ref[...],
                  preferred_element_type=jnp.float32)
    out = out + b2_ref[...]
    o_ref[...] = out.astype(o_ref.dtype)


def prepare_params(w1, b1, w2, b2):
    """One-time weight prep: transpose to (in, out), zero-pad features to 128 lanes, cast bf16.

    Zero-padded hidden columns stay exactly zero through LeakyReLU/dropout and the padded
    rows of W2^T are zero, so padding never changes the result.
    """
    H, D_in = w1.shape
    D_out = w2.shape[0]
    Hp = _round_up(H, 128)
    Dp = _round_up(D_out, 128)
    w1t = jnp.zeros((D_in, Hp), jnp.bfloat16).at[:, :H].set(w1.T.astype(jnp.bfloat16))
    b1p = jnp.zeros((1, Hp), jnp.float32).at[:, :H].set(b1.astype(jnp.float32))
    w2t = jnp.zeros((Hp, Dp), jnp.bfloat16).at[:H, :D_out].set(w2.T.astype(jnp.bfloat16))
    b2p = jnp.zeros((1, Dp), jnp.float32).at[:, :D_out].set(b2.astype(jnp.float32))
    return w1t, b1p, w2t, b2p, D_out


def fully_connected_forward(x, w1t, b1p, w2t, b2p, out_dims, seed):
    """x: (B, D_in) f32; prepared params from prepare_params(); returns (B, out_dims) f32."""
    B, D_in = x.shape
    Hp = w1t.shape[1]
    Dp = w2t.shape[1]

    # Batch tile: multiple of 8 sublanes, 128 rows once the batch is big enough.
    TB = 128 if B >= 128 else _round_up(B, 8)
    Bp = _round_up(B, TB)
    xp = x if Bp == B else jnp.pad(x, ((0, Bp - B), (0, 0)))
    grid = (Bp // TB,)
    seed_arr = jnp.asarray([seed], dtype=jnp.int32)

    # Advisory cost + VMEM budget (resident weights + double-buffered x/out tiles + f32 h).
    flops = 2 * Bp * (D_in * Hp + Hp * Dp)
    bytes_accessed = (xp.size * 4 + w1t.size * 2 + w2t.size * 2
                      + (b1p.size + b2p.size) * 4 + Bp * Dp * 4)
    resident = w1t.size * 2 + w2t.size * 2 + (b1p.size + b2p.size) * 4
    streamed = 2 * (TB * D_in + TB * Dp) * 4
    scratch = 4 * TB * Hp * 4
    vmem_limit = int(min(max(2 * (resident + streamed + scratch), 16 << 20), 60 << 20))

    out_p = pl.pallas_call(
        _mlp_kernel,
        out_shape=jax.ShapeDtypeStruct((Bp, Dp), jnp.float32),
        grid=grid,
        in_specs=[
            pl.BlockSpec(memory_space=pltpu.MemorySpace.SMEM),   # seed scalar
            pl.BlockSpec((TB, D_in), lambda i: (i, 0)),          # x: batch-tiled, pipelined
            pl.BlockSpec((D_in, Hp), lambda i: (0, 0)),          # W1^T: VMEM-resident
            pl.BlockSpec((1, Hp), lambda i: (0, 0)),             # b1
            pl.BlockSpec((Hp, Dp), lambda i: (0, 0)),            # W2^T: VMEM-resident
            pl.BlockSpec((1, Dp), lambda i: (0, 0)),             # b2
        ],
        out_specs=pl.BlockSpec((TB, Dp), lambda i: (i, 0)),
        compiler_params=pltpu.CompilerParams(
            dimension_semantics=("parallel",),
            vmem_limit_bytes=vmem_limit,
        ),
        cost_estimate=pl.CostEstimate(
            flops=flops, transcendentals=0, bytes_accessed=bytes_accessed),
    )(seed_arr, xp, w1t, b1p, w2t, b2p)

    return out_p[:B, :out_dims]


def init_params(key, input_dims, hidden_dims, out_dims):
    """Matches the module's __init__: kaiming_normal_(a=1) weights, nn.Linear default biases."""
    k1, k2, k3, k4 = jax.random.split(key, 4)
    std1 = 1.0 / (input_dims ** 0.5)
    std2 = 1.0 / (hidden_dims ** 0.5)
    w1 = std1 * jax.random.normal(k1, (hidden_dims, input_dims), jnp.float32)
    b1 = jax.random.uniform(k2, (hidden_dims,), jnp.float32, -std1, std1)
    w2 = std2 * jax.random.normal(k3, (out_dims, hidden_dims), jnp.float32)
    b2 = jax.random.uniform(k4, (out_dims,), jnp.float32, -std2, std2)
    return w1, b1, w2, b2


if __name__ == "__main__":
    key = jax.random.PRNGKey(0)
    kx, kp = jax.random.split(key)

    batch, input_dims, hidden_dims, out_dims = 8, 32, 64, 16
    x = jax.random.normal(kx, (batch, input_dims), jnp.float32)
    w1, b1, w2, b2 = init_params(kp, input_dims, hidden_dims, out_dims)

    w1t, b1p, w2t, b2p, _ = prepare_params(w1, b1, w2, b2)
    seed = 1234
    out = fully_connected_forward(x, w1t, b1p, w2t, b2p, out_dims, seed)
    out = jax.block_until_ready(out)
    assert out.shape == (batch, out_dims), out.shape
    assert bool(jnp.all(jnp.isfinite(out)))

    # Pure-JAX reference using the SAME hash-based dropout mask (bf16-matmul tolerance).
    Hp = w1t.shape[1]
    h_ref = x @ w1.T + b1
    h_ref = jnp.where(h_ref >= 0, h_ref, LEAKY_SLOPE * h_ref)
    rows = jnp.arange(batch, dtype=jnp.uint32)[:, None]
    cols = jnp.arange(hidden_dims, dtype=jnp.uint32)[None, :]
    gidx = rows * jnp.uint32(Hp) + cols
    bits = _hash_u32(gidx ^ (jnp.uint32(seed) * jnp.uint32(_GOLDEN)))
    keep = bits >= jnp.uint32(_DROP_THRESHOLD)
    h_ref = jnp.where(keep, h_ref / (1.0 - DROP_P), 0.0)
    out_ref = h_ref @ w2.T + b2
    assert bool(jnp.allclose(out, out_ref, atol=1e-1, rtol=1e-1)), \
        float(jnp.max(jnp.abs(out - out_ref)))

    print("KERNEL_OK")
</pallas_src>

<mosaic_0001>
module attributes {stable_mosaic.version = 11 : i64} {
  func.func @_mlp_kernel(%arg0: i32, %arg1: memref<1xi32, #tpu.memory_space<smem>>, %arg2: memref<8x32xf32, #tpu.memory_space<vmem>>, %arg3: memref<32x128xbf16, #tpu.memory_space<vmem>>, %arg4: memref<1x128xf32, #tpu.memory_space<vmem>>, %arg5: memref<128x128xbf16, #tpu.memory_space<vmem>>, %arg6: memref<1x128xf32, #tpu.memory_space<vmem>>, %arg7: memref<8x128xf32, #tpu.memory_space<vmem>>) attributes {dimension_semantics = [#tpu.dimension_semantics<parallel>], iteration_bounds = array<i64: 1>, scalar_prefetch = 0 : i64, scratch_operands = 0 : i64, tpu.core_type = #tpu.core_type<tc>, window_params = [{transform_indices = @transform_0, window_bounds = array<i64: 1>}, {transform_indices = @transform_1, window_bounds = array<i64: 8, 32>}, {pipeline_mode = #tpu.pipeline_mode<synchronous>, transform_indices = @transform_2, window_bounds = array<i64: 32, 128>}, {pipeline_mode = #tpu.pipeline_mode<synchronous>, transform_indices = @transform_3, window_bounds = array<i64: 1, 128>}, {pipeline_mode = #tpu.pipeline_mode<synchronous>, transform_indices = @transform_4, window_bounds = array<i64: 128, 128>}, {pipeline_mode = #tpu.pipeline_mode<synchronous>, transform_indices = @transform_5, window_bounds = array<i64: 1, 128>}, {transform_indices = @transform_6, window_bounds = array<i64: 8, 128>}]} {
    %c0 = arith.constant 0 : index
    %c0_0 = arith.constant 0 : index
    %0 = vector.load %arg2[%c0, %c0_0] : memref<8x32xf32, #tpu.memory_space<vmem>>, vector<8x32xf32>
    %1 = arith.truncf %0 : vector<8x32xf32> to vector<8x32xbf16>
    %c0_1 = arith.constant 0 : index
    %c0_2 = arith.constant 0 : index
    %2 = vector.load %arg3[%c0_1, %c0_2] : memref<32x128xbf16, #tpu.memory_space<vmem>>, vector<32x128xbf16>
    %cst = arith.constant dense<0.000000e+00> : vector<8x128xf32>
    %3 = tpu.matmul %1, %2, %cst {dimension_numbers = #tpu.dot_dimension_numbers<[1], [0], [0], [1], [0, 0, 1, 1], [], []>} : vector<8x32xbf16>, vector<32x128xbf16>, vector<8x128xf32> -> vector<8x128xf32>
    %c0_3 = arith.constant 0 : index
    %c0_4 = arith.constant 0 : index
    %4 = vector.load %arg4[%c0_3, %c0_4] : memref<1x128xf32, #tpu.memory_space<vmem>>, vector<1x128xf32>
    %5 = vector.broadcast %4 : vector<1x128xf32> to vector<8x128xf32>
    %6 = arith.addf %3, %5 : vector<8x128xf32>
    %cst_5 = arith.constant 0.000000e+00 : f32
    %7 = vector.broadcast %cst_5 : f32 to vector<8x128xf32>
    %8 = arith.cmpf oge, %6, %7 : vector<8x128xf32>
    %cst_6 = arith.constant 0.00999999977 : f32
    %9 = vector.broadcast %cst_6 : f32 to vector<8x128xf32>
    %10 = arith.mulf %9, %6 : vector<8x128xf32>
    %11 = arith.select %8, %6, %10 : vector<8x128xi1>, vector<8x128xf32>
    %c8_i32 = arith.constant 8 : i32
    %12 = arith.muli %arg0, %c8_i32 : i32
    %13 = tpu.iota {dimensions = array<i32: 0>} : vector<8x128xi32>
    %14 = tpu.iota {dimensions = array<i32: 1>} : vector<8x128xi32>
    %15 = vector.broadcast %12 : i32 to vector<8x128xi32>
    %16 = arith.addi %15, %13 : vector<8x128xi32>
    %c128_i32 = arith.constant 128 : i32
    %17 = vector.broadcast %c128_i32 : i32 to vector<8x128xi32>
    %18 = arith.muli %16, %17 : vector<8x128xi32>
    %19 = arith.addi %18, %14 : vector<8x128xi32>
    %c0_7 = arith.constant 0 : index
    %20 = memref.load %arg1[%c0_7] : memref<1xi32, #tpu.memory_space<smem>>
    %c-1640531527_i32 = arith.constant -1640531527 : i32
    %21 = arith.muli %20, %c-1640531527_i32 : i32
    %22 = vector.broadcast %21 : i32 to vector<8x128xi32>
    %23 = arith.xori %19, %22 : vector<8x128xi32>
    %c16_i32 = arith.constant 16 : i32
    %24 = vector.broadcast %c16_i32 : i32 to vector<8x128xi32>
    %25 = arith.shrui %23, %24 : vector<8x128xi32>
    %26 = arith.xori %23, %25 : vector<8x128xi32>
    %c2146121005_i32 = arith.constant 2146121005 : i32
    %27 = vector.broadcast %c2146121005_i32 : i32 to vector<8x128xi32>
    %28 = arith.muli %26, %27 : vector<8x128xi32>
    %c15_i32 = arith.constant 15 : i32
    %29 = vector.broadcast %c15_i32 : i32 to vector<8x128xi32>
    %30 = arith.shrui %28, %29 : vector<8x128xi32>
    %31 = arith.xori %28, %30 : vector<8x128xi32>
    %c-2073254261_i32 = arith.constant -2073254261 : i32
    %32 = vector.broadcast %c-2073254261_i32 : i32 to vector<8x128xi32>
    %33 = arith.muli %31, %32 : vector<8x128xi32>
    %c16_i32_8 = arith.constant 16 : i32
    %34 = vector.broadcast %c16_i32_8 : i32 to vector<8x128xi32>
    %35 = arith.shrui %33, %34 : vector<8x128xi32>
    %36 = arith.xori %33, %35 : vector<8x128xi32>
    %c644245094_i32 = arith.constant 644245094 : i32
    %37 = vector.broadcast %c644245094_i32 : i32 to vector<8x128xi32>
    %38 = arith.cmpi uge, %36, %37 : vector<8x128xi32>
    %cst_9 = arith.constant 1.17647064 : f32
    %39 = vector.broadcast %cst_9 : f32 to vector<8x128xf32>
    %40 = arith.mulf %11, %39 : vector<8x128xf32>
    %cst_10 = arith.constant 0.000000e+00 : f32
    %41 = vector.broadcast %cst_10 : f32 to vector<8x128xf32>
    %42 = arith.select %38, %40, %41 : vector<8x128xi1>, vector<8x128xf32>
    %43 = arith.truncf %42 : vector<8x128xf32> to vector<8x128xbf16>
    %c0_11 = arith.constant 0 : index
    %c0_12 = arith.constant 0 : index
    %44 = vector.load %arg5[%c0_11, %c0_12] : memref<128x128xbf16, #tpu.memory_space<vmem>>, vector<128x128xbf16>
    %cst_13 = arith.constant dense<0.000000e+00> : vector<8x128xf32>
    %45 = tpu.matmul %43, %44, %cst_13 {dimension_numbers = #tpu.dot_dimension_numbers<[1], [0], [0], [1], [0, 0, 1, 1], [], []>} : vector<8x128xbf16>, vector<128x128xbf16>, vector<8x128xf32> -> vector<8x128xf32>
    %c0_14 = arith.constant 0 : index
    %c0_15 = arith.constant 0 : index
    %46 = vector.load %arg6[%c0_14, %c0_15] : memref<1x128xf32, #tpu.memory_space<vmem>>, vector<1x128xf32>
    %47 = vector.broadcast %46 : vector<1x128xf32> to vector<8x128xf32>
    %48 = arith.addf %45, %47 : vector<8x128xf32>
    %c0_16 = arith.constant 0 : index
    %c0_17 = arith.constant 0 : index
    %49 = vector.load %arg7[%c0_16, %c0_17] : memref<8x128xf32, #tpu.memory_space<vmem>>, vector<8x128xf32>
    tpu.vector_store %arg7[%c0_16, %c0_17], %48 {strides = array<i32>} : memref<8x128xf32, #tpu.memory_space<vmem>>, vector<8x128xf32>,
    return
  }
  func.func @transform_0(%arg0: i32) -> i32 {
    %c0_i32 = arith.constant 0 : i32
    %c0_i32_0 = arith.constant 0 : i32
    return %c0_i32 : i32
  }
  func.func @transform_1(%arg0: i32) -> (i32, i32) {
    %c0_i32 = arith.constant 0 : i32
    %c0_i32_0 = arith.constant 0 : i32
    return %arg0, %c0_i32 : i32, i32
  }
  func.func @transform_2(%arg0: i32) -> (i32, i32) {
    %c0_i32 = arith.constant 0 : i32
    %c0_i32_0 = arith.constant 0 : i32
    %c0_i32_1 = arith.constant 0 : i32
    return %c0_i32, %c0_i32_0 : i32, i32
  }
  func.func @transform_3(%arg0: i32) -> (i32, i32) {
    %c0_i32 = arith.constant 0 : i32
    %c0_i32_0 = arith.constant 0 : i32
    %c0_i32_1 = arith.constant 0 : i32
    return %c0_i32, %c0_i32_0 : i32, i32
  }
  func.func @transform_4(%arg0: i32) -> (i32, i32) {
    %c0_i32 = arith.constant 0 : i32
    %c0_i32_0 = arith.constant 0 : i32
    %c0_i32_1 = arith.constant 0 : i32
    return %c0_i32, %c0_i32_0 : i32, i32
  }
  func.func @transform_5(%arg0: i32) -> (i32, i32) {
    %c0_i32 = arith.constant 0 : i32
    %c0_i32_0 = arith.constant 0 : i32
    %c0_i32_1 = arith.constant 0 : i32
    return %c0_i32, %c0_i32_0 : i32, i32
  }
  func.func @transform_6(%arg0: i32) -> (i32, i32) {
    %c0_i32 = arith.constant 0 : i32
    %c0_i32_0 = arith.constant 0 : i32
    return %arg0, %c0_i32 : i32, i32
  }
}

</mosaic_0001>

<llo_original>
// kernel: tpu_custom_call.1
$region0: #{tpu_custom_call.1}
  #allocation0 [shape = 'u32[]', space=smem, size = 0x4, offset = 0x4, fixed_abs, tag = 'smem constant byte address 0x4 - core index']
  #allocation1 [shape = 'u32[72,128]{1,0:T(1,128)}', space=vmem, size = 0x9000, scoped, tag = 'internal scratch']
  #allocation2 [shape = 's32[1]{0:T(128)S(6)}', space=smem, size = 0x200, scoped, tag = 'scoped memory for tpu_custom_call.1']
  %s0 = inlined_call_operand.<no memory space> [shape: s32[1], index: 0, kind: input, shape index: {}]
  %s1 = inlined_call_operand.hbm [shape: f32[8,32], index: 1, kind: input, shape index: {}]
  %s2 = inlined_call_operand.hbm [shape: bf16[32,128], index: 2, kind: input, shape index: {}]
  %s3 = inlined_call_operand.vmem [shape: f32[1,128], index: 3, kind: input, shape index: {}]
  %s4 = inlined_call_operand.hbm [shape: bf16[128,128], index: 4, kind: input, shape index: {}]
  %s5 = inlined_call_operand.vmem [shape: f32[1,128], index: 5, kind: input, shape index: {}]
  %s6 = inlined_call_operand.hbm [shape: f32[8,128], index: 6, kind: output, shape index: {}]
  %s7 = sld [smem:[#allocation0]]
  $region46: #{tpu_custom_call.1} parent=0
    _
  %s9 = ssub.s32 1, %s7
  %s10 = scalar_select 0, %s9, %s7
  %11 = sst [smem:[#allocation2]] %s0
  $region1: #{tpu_custom_call.1} parent=0
    #allocation3 [shape = 'u8[4096]{0}', space=vmem, size = 0x1000, scoped, tag = 'input window, operand 1, single buffered']
    #allocation4 [shape = 's32[1]{0}', space=sflag, size = 0x4, scoped, tag = 'scoped memory for tpu_custom_call.1']
    #allocation5 [shape = 's32[1]{0}', space=sflag, size = 0x4, scoped, tag = 'scoped memory for tpu_custom_call.1']
    #allocation6 [shape = 'u8[8192]{0}', space=vmem, size = 0x2000, scoped, tag = 'input window, operand 2, single buffered']
    #allocation7 [shape = 's32[1]{0}', space=sflag, size = 0x4, scoped, tag = 'scoped memory for tpu_custom_call.1']
    #allocation8 [shape = 'u8[32768]{0}', space=vmem, size = 0x8000, scoped, tag = 'input window, operand 4, single buffered']
    #allocation9 [shape = 'u8[4096]{0}', space=vmem, size = 0x1000, scoped, tag = 'output window, operand 0, single buffered']
    %12 = vsyncpa [#allocation4], 0
    %13 = vsyncpa [#allocation7], 0
    %14 = vsyncpa [#allocation5], 0
    // Predicated region
    $region2: #{tpu_custom_call.1} parent=1 // pred_check
      _
    $region3: #{tpu_custom_call.1} parent=1 // pred_check_branch
      %16 = sbr.rel (0) target = $region5
    $region4: #{tpu_custom_call.1} parent=1 // pred_region
      _
    $region5: #{tpu_custom_call.1} parent=1 // pred_fallthru
      _
    // Predicated region
    $region6: #{tpu_custom_call.1} parent=1 // pred_check
      _
    $region7: #{tpu_custom_call.1} parent=1 // pred_check_branch
      %18 = sbr.rel (0) target = $region9
    $region8: #{tpu_custom_call.1} parent=1 // pred_region
      %20 = vsyncadd [#allocation4], 0
      %s22 = sshll.u32 %s1, 4
      %s23 = int_to_ptr.hbm [resolvable:$true] %s22
      %s24 = sshll.u32 [#allocation3], 4
      %s25 = int_to_ptr.vmem [resolvable:$true] %s24
      %27 = dma.hbm_to_vmem [thread:$0]  %s23, 128, %s25, [#allocation4]
    $region9: #{tpu_custom_call.1} parent=1 // pred_fallthru
      _
    // Predicated region
    $region10: #{tpu_custom_call.1} parent=1 // pred_check
      _
    $region11: #{tpu_custom_call.1} parent=1 // pred_check_branch
      %29 = sbr.rel (0) target = $region13
    $region12: #{tpu_custom_call.1} parent=1 // pred_region
      %31 = vsyncadd [#allocation7], 0
      %s32 = sshll.u32 %s2, 4
      %s33 = int_to_ptr.hbm [resolvable:$true] %s32
      %s34 = sshll.u32 [#allocation6], 4
      %s35 = int_to_ptr.vmem [resolvable:$true] %s34
      %40 = dma.hbm_to_vmem [thread:$0]  %s33, 256, %s35, [#allocation7], 64, 64, 4
    $region13: #{tpu_custom_call.1} parent=1 // pred_fallthru
      _
    // Predicated region
    $region14: #{tpu_custom_call.1} parent=1 // pred_check
      _
    $region15: #{tpu_custom_call.1} parent=1 // pred_check_branch
      %42 = sbr.rel (0) target = $region17
    $region16: #{tpu_custom_call.1} parent=1 // pred_region
      _
    $region17: #{tpu_custom_call.1} parent=1 // pred_fallthru
      _
    // Predicated region
    $region18: #{tpu_custom_call.1} parent=1 // pred_check
      _
    $region19: #{tpu_custom_call.1} parent=1 // pred_check_branch
      %44 = sbr.rel (0) target = $region21
    $region20: #{tpu_custom_call.1} parent=1 // pred_region
      %46 = vsyncadd [#allocation7], 0
      %s47 = sshll.u32 %s4, 4
      %s48 = int_to_ptr.hbm [resolvable:$true] %s47
      %s49 = sshll.u32 [#allocation8], 4
      %s50 = int_to_ptr.vmem [resolvable:$true] %s49
      %55 = dma.hbm_to_vmem [thread:$0]  %s48, 1024, %s50, [#allocation7], 64, 64, 4
    $region21: #{tpu_custom_call.1} parent=1 // pred_fallthru
      _
    // Predicated region
    $region22: #{tpu_custom_call.1} parent=1 // pred_check
      _
    $region23: #{tpu_custom_call.1} parent=1 // pred_check_branch
      %57 = sbr.rel (0) target = $region25
    $region24: #{tpu_custom_call.1} parent=1 // pred_region
      _
    $region25: #{tpu_custom_call.1} parent=1 // pred_fallthru
      _
    // Predicated region
    $region26: #{tpu_custom_call.1} parent=1 // pred_check
      _
    $region27: #{tpu_custom_call.1} parent=1 // pred_check_branch
      %59 = sbr.rel (0) target = $region29
    $region28: #{tpu_custom_call.1} parent=1 // pred_region
      %61 = dma.done [#allocation4], 128
    $region29: #{tpu_custom_call.1} parent=1 // pred_fallthru
      _
    // Predicated region
    $region30: #{tpu_custom_call.1} parent=1 // pred_check
      _
    $region31: #{tpu_custom_call.1} parent=1 // pred_check_branch
      %63 = sbr.rel (0) target = $region33
    $region32: #{tpu_custom_call.1} parent=1 // pred_region
      %65 = dma.done [#allocation7], 256
    $region33: #{tpu_custom_call.1} parent=1 // pred_fallthru
      _
    // Predicated region
    $region34: #{tpu_custom_call.1} parent=1 // pred_check
      _
    $region35: #{tpu_custom_call.1} parent=1 // pred_check_branch
      %67 = sbr.rel (0) target = $region37
    $region36: #{tpu_custom_call.1} parent=1 // pred_region
      %69 = dma.done [#allocation7], 1024
    $region37: #{tpu_custom_call.1} parent=1 // pred_fallthru
      _
    %v71 = vld [vmem:[#allocation3] sm:$0xff]
    %v72 = vpack.c.bf16 %v71, %v71
    %v73 = vld [vmem:[#allocation6] sm:$0xf]
    %v74 = vld [vmem:[#allocation6 + $0x4] sm:$0xf]
    %v75 = vld [vmem:[#allocation6 + $0x8] sm:$0xf]
    %v76 = vld [vmem:[#allocation6 + $0xc] sm:$0xf]
    %v77 = vld [vmem:[%s3] sm:$0x1]
    %v79 = vperm.slane %v77, 0
    %v85 = vunpack.c.l.b16 %v73
    %v86 = vunpack.c.l.b16 %v74
    %v87 = vunpack.c.l.b16 %v75
    %v88 = vunpack.c.l.b16 %v76
    %v89 = vpack.c.b16 %v86, %v85
    %v90 = vpack.c.b16 %v88, %v87
    %vm93 = vcmask 261120
    %v95 = vsel %vm93, %v72, 0
    %97 = vmatpush.bf16.msra.mxu0 0
    %98 = vmatpush.bf16.msra.mxu0 0
    %99 = vmatpush.bf16.msra.mxu0 0
    %100 = vmatpush.bf16.msra.mxu0 0
    %101 = vmatpush.bf16.msra.mxu0 0
    %102 = vmatpush.bf16.msra.mxu0 0
    %103 = vmatpush.bf16.msra.mxu0 %v90
    %104 = vmatpush.bf16.msra.mxu0 %v89
    %105 = vmatmul.bf16.gmra.mxu0 %v95
    %v106 = vpop.f32.mrf.mxu0
    %v107 = vadd.f32 %v79, %v106
    %v108 = vpop.f32.mrf.mxu0
    %109 = vdwg.mxu0
    %vm110 = vcmp.ge.f32.partialorder %v107, 0.0
    %v111 = vmul.f32 %v107, 0.01
    %v112 = vsel %vm110, %v107, %v111
    %s113 = smul.u32 0, 8
    %v114 = vlaneseq
    %v115 = vshrl.u32 %v114, 7
    %v116 = vlaneseq
    %v117 = vand.u32 %v116, 127
    %v118 = vstv %s113
    %v119 = vadd.s32 %v118, %v115
    %v120 = vmul.u32 %v119, 128
    %v121 = vadd.s32 %v120, %v117
    %s122 = sld [smem:[#allocation2]]
    %s123 = smul.u32 %s122, 2654435769
    %v124 = vstv %s123
    %v125 = vxor.u32 %v121, %v124
    %v126 = vshrl.u32 %v125, 16
    %v127 = vxor.u32 %v125, %v126
    %v128 = vmul.u32 %v127, 2146121005
    %v129 = vshrl.u32 %v128, 15
    %v130 = vxor.u32 %v128, %v129
    %v131 = vmul.u32 %v130, 2221713035
    %v132 = vshrl.u32 %v131, 16
    %v133 = vxor.u32 %v131, %v132
    %v134 = vadd.s32 %v133, 2147483648
    %vm136 = vcmp.ge.s32.totalorder %v134, 2791728742
    %v137 = vmul.f32 %v112, 1.1764706
    %v138 = vsel %vm136, %v137, 0.0
    %v139 = vpack.c.bf16 %v138, %v138
    %v140 = vld [vmem:[#allocation8] sm:$0xf]
    %v141 = vld [vmem:[#allocation8 + $0x4] sm:$0xf]
    %v142 = vld [vmem:[#allocation8 + $0x8] sm:$0xf]
    %v143 = vld [vmem:[#allocation8 + $0xc] sm:$0xf]
    %v144 = vld [vmem:[#allocation8 + $0x10] sm:$0xf]
    %v145 = vld [vmem:[#allocation8 + $0x14] sm:$0xf]
    %v146 = vld [vmem:[#allocation8 + $0x18] sm:$0xf]
    %v147 = vld [vmem:[#allocation8 + $0x1c] sm:$0xf]
    %v148 = vld [vmem:[#allocation8 + $0x20] sm:$0xf]
    %v149 = vld [vmem:[#allocation8 + $0x24] sm:$0xf]
    %v150 = vld [vmem:[#allocation8 + $0x28] sm:$0xf]
    %v151 = vld [vmem:[#allocation8 + $0x2c] sm:$0xf]
    %v152 = vld [vmem:[#allocation8 + $0x30] sm:$0xf]
    %v153 = vld [vmem:[#allocation8 + $0x34] sm:$0xf]
    %v154 = vld [vmem:[#allocation8 + $0x38] sm:$0xf]
    %v155 = vld [vmem:[#allocation8 + $0x3c] sm:$0xf]
    %v156 = vld [vmem:[%s5] sm:$0x1]
    %v158 = vperm.slane %v156, 0
    %v176 = vunpack.c.l.b16 %v140
    %v177 = vunpack.c.l.b16 %v141
    %v178 = vunpack.c.l.b16 %v142
    %v179 = vunpack.c.l.b16 %v143
    %v180 = vunpack.c.l.b16 %v144
    %v181 = vunpack.c.l.b16 %v145
    %v182 = vunpack.c.l.b16 %v146
    %v183 = vunpack.c.l.b16 %v147
    %v184 = vunpack.c.l.b16 %v148
    %v185 = vunpack.c.l.b16 %v149
    %v186 = vunpack.c.l.b16 %v150
    %v187 = vunpack.c.l.b16 %v151
    %v188 = vunpack.c.l.b16 %v152
    %v189 = vunpack.c.l.b16 %v153
    %v190 = vunpack.c.l.b16 %v154
    %v191 = vunpack.c.l.b16 %v155
    %v192 = vpack.c.b16 %v177, %v176
    %v193 = vpack.c.b16 %v179, %v178
    %v194 = vpack.c.b16 %v181, %v180
    %v195 = vpack.c.b16 %v183, %v182
    %v196 = vpack.c.b16 %v185, %v184
    %v197 = vpack.c.b16 %v187, %v186
    %v198 = vpack.c.b16 %v189, %v188
    %v199 = vpack.c.b16 %v191, %v190
    %208 = vmatpush.bf16.msra.mxu0 %v199
    %209 = vmatpush.bf16.msra.mxu0 %v198
    %210 = vmatpush.bf16.msra.mxu0 %v197
    %211 = vmatpush.bf16.msra.mxu0 %v196
    %212 = vmatpush.bf16.msra.mxu0 %v195
    %213 = vmatpush.bf16.msra.mxu0 %v194
    %214 = vmatpush.bf16.msra.mxu0 %v193
    %215 = vmatpush.bf16.msra.mxu0 %v192
    %216 = vmatmul.bf16.gmra.mxu0 %v139
    %v217 = vpop.f32.mrf.mxu0
    %v218 = vadd.f32 %v158, %v217
    %v219 = vpop.f32.mrf.mxu0
    %220 = vdwg.mxu0
    %221 = vst [vmem:[#allocation9] sm:$0xff] %v218
    // Predicated region
    $region38: #{tpu_custom_call.1} parent=1 // pred_check
      _
    $region39: #{tpu_custom_call.1} parent=1 // pred_check_branch
      %223 = sbr.rel (0) target = $region41
    $region40: #{tpu_custom_call.1} parent=1 // pred_region
      %225 = vsyncadd [#allocation5], 0
      %s227 = sshll.u32 [#allocation9], 4
      %s228 = int_to_ptr.vmem [resolvable:$true] %s227
      %s229 = sshll.u32 %s6, 4
      %s230 = int_to_ptr.hbm [resolvable:$true] %s229
      %232 = dma.vmem_to_hbm [thread:$0]  %s228, 128, %s230, [#allocation5]
    $region41: #{tpu_custom_call.1} parent=1 // pred_fallthru
      _
    // Predicated region
    $region42: #{tpu_custom_call.1} parent=1 // pred_check
      _
    $region43: #{tpu_custom_call.1} parent=1 // pred_check_branch
      %234 = sbr.rel (0) target = $region45
    $region44: #{tpu_custom_call.1} parent=1 // pred_region
      %236 = dma.done [#allocation5], 128
    $region45: #{tpu_custom_call.1} parent=1 // pred_fallthru
      _
    %237 = vsyncpa [#allocation4], 1
    %238 = vsyncpa [#allocation7], 1
    %239 = vsyncpa [#allocation5], 1

</llo_original>
